<compile_context>
chip_gen: v5e
topology: v5e:2x2
jax: 0.10.0
libtpu: 0.0.40
codegen_flags: <defaults>
</compile_context>

<pallas_src>
from functools import partial

import jax
import jax.numpy as jnp
from jax.experimental import pallas as pl
from jax.experimental.pallas import tpu as pltpu


def policy_forward_kernel(xt_ref, w1_ref, b1_ref, w2_ref, b2_ref,
                          w3_ref, b3_ref, a_t_ref, out_t_ref):
    # Everything is feature-major: batch on the 128-lane axis.
    xt = xt_ref[...]                                             # (in, tb)

    # fc1 + relu:  h1^T = W1 @ x^T + b1      (hidden, tb)
    # TODO(synk): contraction depth is only input_size=4; could be done as 4
    # broadcast FMAs on the VPU instead of the MXU if it shows on the
    # critical path.
    h1 = jnp.dot(w1_ref[...], xt, preferred_element_type=jnp.float32) + b1_ref[...]
    h1 = jnp.maximum(h1, 0.0)

    # fc2 + relu:  h2^T = W2 @ h1^T + b2     (hidden, tb)
    h2 = jnp.dot(w2_ref[...], h1, preferred_element_type=jnp.float32) + b2_ref[...]
    h2 = jnp.maximum(h2, 0.0)

    # fc3:  logits^T = W3 @ h2^T + b3        (A, tb)
    logits = jnp.dot(w3_ref[...], h2,
                     preferred_element_type=jnp.float32) + b3_ref[...]

    # log_softmax over the action axis (axis 0 in the transposed layout).
    m = jnp.max(logits, axis=0, keepdims=True)
    shifted = logits - m
    lse = jnp.log(jnp.sum(jnp.exp(shifted), axis=0, keepdims=True))
    logp = shifted - lse                                         # (A, tb)

    # out^T = a^T @ logp^T — lane-dense store along the batch axis.
    out_t_ref[...] = jnp.dot(a_t_ref[...], logp,
                             preferred_element_type=jnp.float32)  # (K, tb)


def _round_up(n, m):
    return ((n + m - 1) // m) * m


@partial(jax.jit, static_argnames=("batch_tile",))
def policy_forward(x, params, a, batch_tile=512):
    """Jitted Pallas wrapper.

    params = (w1, b1, w2, b2, w3, b3); Wi in PyTorch (out, in) layout,
    bi as (out, 1) columns.  x: (batch, input_size), a: (action_size, K).
    Returns (batch, K).
    """
    w1, b1, w2, b2, w3, b3 = params
    batch, input_size = x.shape
    k_out = a.shape[1]

    # Batch tile: a multiple of 128 on the lane axis.  Use one tile covering
    # the whole (128-aligned) batch when it fits, otherwise `batch_tile`-wide
    # slabs (default 512 — big enough to amortize grid-step overhead, small
    # enough to keep (hidden, tb) temporaries within the vreg budget).
    batch_tile = _round_up(batch_tile, 128)
    padded_min = _round_up(batch, 128)
    tb = min(batch_tile, padded_min)
    padded = _round_up(batch, tb)

    # Feature-major x: (input_size, padded_batch).  Tiny (input_size rows),
    # so the pad + transpose here is negligible HBM traffic and fuses in jit.
    x_t = jnp.pad(x, ((0, padded - batch), (0, 0))).T            # (in, padded)
    a_t = a.T                                                    # (K, A)

    out_t = pl.pallas_call(
        policy_forward_kernel,
        out_shape=jax.ShapeDtypeStruct((k_out, padded), jnp.float32),
        grid_spec=pltpu.PrefetchScalarGridSpec(
            num_scalar_prefetch=0,
            grid=(padded // tb,),
            in_specs=[
                # x^T: tiled over the batch (lane) axis, double-buffered.
                pl.BlockSpec((input_size, tb), lambda i: (0, i)),
                # Weights / biases / a^T: full blocks, resident across steps.
                pl.BlockSpec(w1.shape, lambda i: (0, 0)),
                pl.BlockSpec(b1.shape, lambda i: (0, 0)),
                pl.BlockSpec(w2.shape, lambda i: (0, 0)),
                pl.BlockSpec(b2.shape, lambda i: (0, 0)),
                pl.BlockSpec(w3.shape, lambda i: (0, 0)),
                pl.BlockSpec(b3.shape, lambda i: (0, 0)),
                pl.BlockSpec(a_t.shape, lambda i: (0, 0)),
            ],
            # Output transposed: batch on the lane axis -> lane-dense stores.
            out_specs=pl.BlockSpec((k_out, tb), lambda i: (0, i)),
        ),
        compiler_params=pltpu.CompilerParams(
            dimension_semantics=("parallel",)),
    )(x_t, w1, b1, w2, b2, w3, b3, a_t)

    return out_t[:, :batch].T


def init_params(key, input_size, hidden_size, action_size):
    """Deterministic init mimicking PyTorch Linear's U(-1/sqrt(fan_in), ...).

    Weights in PyTorch (out_features, in_features) layout, biases as
    (out_features, 1) columns (feature-major kernel layout).
    """
    ks = jax.random.split(key, 6)

    def lin(kw, kb, fan_in, fan_out):
        bound = 1.0 / jnp.sqrt(jnp.float32(fan_in))
        w = jax.random.uniform(kw, (fan_out, fan_in), jnp.float32, -bound, bound)
        b = jax.random.uniform(kb, (fan_out, 1), jnp.float32, -bound, bound)
        return w, b

    w1, b1 = lin(ks[0], ks[1], input_size, hidden_size)
    w2, b2 = lin(ks[2], ks[3], hidden_size, hidden_size)
    w3, b3 = lin(ks[4], ks[5], hidden_size, action_size)
    return (w1, b1, w2, b2, w3, b3)


def reference_forward(x, params, a):
    w1, b1, w2, b2, w3, b3 = params
    h1 = jax.nn.relu(x @ w1.T + b1.T)
    h2 = jax.nn.relu(h1 @ w2.T + b2.T)
    logp = jax.nn.log_softmax(h2 @ w3.T + b3.T, axis=1)
    return logp @ a


if __name__ == "__main__":
    # Cartpole-ish sizes: 4-dim observation, 32 hidden units, 2 actions.
    input_size, hidden_size, action_size, k_out = 4, 32, 2, 2
    batch = 256

    key = jax.random.PRNGKey(0)
    k_x, k_a, k_p = jax.random.split(key, 3)

    x = jax.random.normal(k_x, (batch, input_size), jnp.float32)
    a = jax.random.normal(k_a, (action_size, k_out), jnp.float32)
    params = init_params(k_p, input_size, hidden_size, action_size)

    # Aligned batch that fits one tile: single grid step.
    out = jax.block_until_ready(policy_forward(x, params, a))
    ref = reference_forward(x, params, a)
    assert out.shape == (batch, k_out)
    assert jnp.allclose(out, ref, atol=1e-5, rtol=1e-5), "mismatch (batched)"

    # Small, non-aligned batch: zero-pad-to-128 + single-tile path.
    x_small = x[:20]
    out_small = jax.block_until_ready(policy_forward(x_small, params, a))
    ref_small = reference_forward(x_small, params, a)
    assert out_small.shape == (20, k_out)
    assert jnp.allclose(out_small, ref_small, atol=1e-5, rtol=1e-5), "mismatch (small)"

    # Larger non-aligned batch: exercises the multi-step grid (tb=512, 2 steps).
    x_big = jax.random.normal(jax.random.PRNGKey(1), (640, input_size), jnp.float32)
    out_big = jax.block_until_ready(policy_forward(x_big, params, a))
    ref_big = reference_forward(x_big, params, a)
    assert out_big.shape == (640, k_out)
    assert jnp.allclose(out_big, ref_big, atol=1e-5, rtol=1e-5), "mismatch (big)"

    print("KERNEL_OK")
</pallas_src>

<mosaic_0001>
module attributes {stable_mosaic.version = 11 : i64} {
  func.func @policy_forward_kernel(%arg0: i32, %arg1: memref<4x256xf32, #tpu.memory_space<vmem>>, %arg2: memref<32x4xf32, #tpu.memory_space<vmem>>, %arg3: memref<32x1xf32, #tpu.memory_space<vmem>>, %arg4: memref<32x32xf32, #tpu.memory_space<vmem>>, %arg5: memref<32x1xf32, #tpu.memory_space<vmem>>, %arg6: memref<2x32xf32, #tpu.memory_space<vmem>>, %arg7: memref<2x1xf32, #tpu.memory_space<vmem>>, %arg8: memref<2x2xf32, #tpu.memory_space<vmem>>, %arg9: memref<2x256xf32, #tpu.memory_space<vmem>>) attributes {dimension_semantics = [#tpu.dimension_semantics<parallel>], iteration_bounds = array<i64: 1>, scalar_prefetch = 0 : i64, scratch_operands = 0 : i64, tpu.core_type = #tpu.core_type<tc>, window_params = [{transform_indices = @transform_0, window_bounds = array<i64: 4, 256>}, {pipeline_mode = #tpu.pipeline_mode<synchronous>, transform_indices = @transform_1, window_bounds = array<i64: 32, 4>}, {pipeline_mode = #tpu.pipeline_mode<synchronous>, transform_indices = @transform_2, window_bounds = array<i64: 32, 1>}, {pipeline_mode = #tpu.pipeline_mode<synchronous>, transform_indices = @transform_3, window_bounds = array<i64: 32, 32>}, {pipeline_mode = #tpu.pipeline_mode<synchronous>, transform_indices = @transform_4, window_bounds = array<i64: 32, 1>}, {pipeline_mode = #tpu.pipeline_mode<synchronous>, transform_indices = @transform_5, window_bounds = array<i64: 2, 32>}, {pipeline_mode = #tpu.pipeline_mode<synchronous>, transform_indices = @transform_6, window_bounds = array<i64: 2, 1>}, {pipeline_mode = #tpu.pipeline_mode<synchronous>, transform_indices = @transform_7, window_bounds = array<i64: 2, 2>}, {transform_indices = @transform_8, window_bounds = array<i64: 2, 256>}]} {
    %c0 = arith.constant 0 : index
    %c0_0 = arith.constant 0 : index
    %0 = vector.load %arg1[%c0, %c0_0] : memref<4x256xf32, #tpu.memory_space<vmem>>, vector<4x256xf32>
    %c0_1 = arith.constant 0 : index
    %c0_2 = arith.constant 0 : index
    %1 = vector.load %arg2[%c0_1, %c0_2] : memref<32x4xf32, #tpu.memory_space<vmem>>, vector<32x4xf32>
    %cst = arith.constant dense<0.000000e+00> : vector<32x256xf32>
    %2 = tpu.matmul %1, %0, %cst {dimension_numbers = #tpu.dot_dimension_numbers<[1], [0], [0], [1], [0, 0, 1, 1], [], []>} : vector<32x4xf32>, vector<4x256xf32>, vector<32x256xf32> -> vector<32x256xf32>
    %c0_3 = arith.constant 0 : index
    %c0_4 = arith.constant 0 : index
    %3 = vector.load %arg3[%c0_3, %c0_4] : memref<32x1xf32, #tpu.memory_space<vmem>>, vector<32x1xf32>
    %4 = vector.broadcast %3 : vector<32x1xf32> to vector<32x256xf32>
    %5 = arith.addf %2, %4 : vector<32x256xf32>
    %cst_5 = arith.constant 0.000000e+00 : f32
    %6 = vector.broadcast %cst_5 : f32 to vector<32x256xf32>
    %7 = arith.maximumf %5, %6 : vector<32x256xf32>
    %c0_6 = arith.constant 0 : index
    %c0_7 = arith.constant 0 : index
    %8 = vector.load %arg4[%c0_6, %c0_7] : memref<32x32xf32, #tpu.memory_space<vmem>>, vector<32x32xf32>
    %cst_8 = arith.constant dense<0.000000e+00> : vector<32x256xf32>
    %9 = tpu.matmul %8, %7, %cst_8 {dimension_numbers = #tpu.dot_dimension_numbers<[1], [0], [0], [1], [0, 0, 1, 1], [], []>} : vector<32x32xf32>, vector<32x256xf32>, vector<32x256xf32> -> vector<32x256xf32>
    %c0_9 = arith.constant 0 : index
    %c0_10 = arith.constant 0 : index
    %10 = vector.load %arg5[%c0_9, %c0_10] : memref<32x1xf32, #tpu.memory_space<vmem>>, vector<32x1xf32>
    %11 = vector.broadcast %10 : vector<32x1xf32> to vector<32x256xf32>
    %12 = arith.addf %9, %11 : vector<32x256xf32>
    %cst_11 = arith.constant 0.000000e+00 : f32
    %13 = vector.broadcast %cst_11 : f32 to vector<32x256xf32>
    %14 = arith.maximumf %12, %13 : vector<32x256xf32>
    %c0_12 = arith.constant 0 : index
    %c0_13 = arith.constant 0 : index
    %15 = vector.load %arg6[%c0_12, %c0_13] : memref<2x32xf32, #tpu.memory_space<vmem>>, vector<2x32xf32>
    %cst_14 = arith.constant dense<0.000000e+00> : vector<2x256xf32>
    %16 = tpu.matmul %15, %14, %cst_14 {dimension_numbers = #tpu.dot_dimension_numbers<[1], [0], [0], [1], [0, 0, 1, 1], [], []>} : vector<2x32xf32>, vector<32x256xf32>, vector<2x256xf32> -> vector<2x256xf32>
    %c0_15 = arith.constant 0 : index
    %c0_16 = arith.constant 0 : index
    %17 = vector.load %arg7[%c0_15, %c0_16] : memref<2x1xf32, #tpu.memory_space<vmem>>, vector<2x1xf32>
    %18 = vector.broadcast %17 : vector<2x1xf32> to vector<2x256xf32>
    %19 = arith.addf %16, %18 : vector<2x256xf32>
    %cst_17 = arith.constant dense<0xFF800000> : vector<256xf32>
    %20 = vector.multi_reduction <maximumf>, %19, %cst_17 [0] : vector<2x256xf32> to vector<256xf32>
    %21 = vector.shape_cast %20 : vector<256xf32> to vector<1x256xf32>
    %22 = vector.broadcast %21 : vector<1x256xf32> to vector<2x256xf32>
    %23 = arith.subf %19, %22 : vector<2x256xf32>
    %24 = math.exp %23 : vector<2x256xf32>
    %cst_18 = arith.constant dense<0.000000e+00> : vector<256xf32>
    %25 = vector.multi_reduction <add>, %24, %cst_18 [0] : vector<2x256xf32> to vector<256xf32>
    %26 = vector.shape_cast %25 : vector<256xf32> to vector<1x256xf32>
    %27 = math.log %26 : vector<1x256xf32>
    %28 = vector.broadcast %27 : vector<1x256xf32> to vector<2x256xf32>
    %29 = arith.subf %23, %28 : vector<2x256xf32>
    %c0_19 = arith.constant 0 : index
    %c0_20 = arith.constant 0 : index
    %30 = vector.load %arg8[%c0_19, %c0_20] : memref<2x2xf32, #tpu.memory_space<vmem>>, vector<2x2xf32>
    %cst_21 = arith.constant dense<0.000000e+00> : vector<2x256xf32>
    %31 = tpu.matmul %30, %29, %cst_21 {dimension_numbers = #tpu.dot_dimension_numbers<[1], [0], [0], [1], [0, 0, 1, 1], [], []>} : vector<2x2xf32>, vector<2x256xf32>, vector<2x256xf32> -> vector<2x256xf32>
    %c0_22 = arith.constant 0 : index
    %c0_23 = arith.constant 0 : index
    %32 = vector.load %arg9[%c0_22, %c0_23] : memref<2x256xf32, #tpu.memory_space<vmem>>, vector<2x256xf32>
    tpu.vector_store %arg9[%c0_22, %c0_23], %31 {strides = array<i32>} : memref<2x256xf32, #tpu.memory_space<vmem>>, vector<2x256xf32>,
    return
  }
  func.func @transform_0(%arg0: i32) -> (i32, i32) {
    %c0_i32 = arith.constant 0 : i32
    %c0_i32_0 = arith.constant 0 : i32
    return %c0_i32, %arg0 : i32, i32
  }
  func.func @transform_1(%arg0: i32) -> (i32, i32) {
    %c0_i32 = arith.constant 0 : i32
    %c0_i32_0 = arith.constant 0 : i32
    %c0_i32_1 = arith.constant 0 : i32
    return %c0_i32, %c0_i32_0 : i32, i32
  }
  func.func @transform_2(%arg0: i32) -> (i32, i32) {
    %c0_i32 = arith.constant 0 : i32
    %c0_i32_0 = arith.constant 0 : i32
    %c0_i32_1 = arith.constant 0 : i32
    return %c0_i32, %c0_i32_0 : i32, i32
  }
  func.func @transform_3(%arg0: i32) -> (i32, i32) {
    %c0_i32 = arith.constant 0 : i32
    %c0_i32_0 = arith.constant 0 : i32
    %c0_i32_1 = arith.constant 0 : i32
    return %c0_i32, %c0_i32_0 : i32, i32
  }
  func.func @transform_4(%arg0: i32) -> (i32, i32) {
    %c0_i32 = arith.constant 0 : i32
    %c0_i32_0 = arith.constant 0 : i32
    %c0_i32_1 = arith.constant 0 : i32
    return %c0_i32, %c0_i32_0 : i32, i32
  }
  func.func @transform_5(%arg0: i32) -> (i32, i32) {
    %c0_i32 = arith.constant 0 : i32
    %c0_i32_0 = arith.constant 0 : i32
    %c0_i32_1 = arith.constant 0 : i32
    return %c0_i32, %c0_i32_0 : i32, i32
  }
  func.func @transform_6(%arg0: i32) -> (i32, i32) {
    %c0_i32 = arith.constant 0 : i32
    %c0_i32_0 = arith.constant 0 : i32
    %c0_i32_1 = arith.constant 0 : i32
    return %c0_i32, %c0_i32_0 : i32, i32
  }
  func.func @transform_7(%arg0: i32) -> (i32, i32) {
    %c0_i32 = arith.constant 0 : i32
    %c0_i32_0 = arith.constant 0 : i32
    %c0_i32_1 = arith.constant 0 : i32
    return %c0_i32, %c0_i32_0 : i32, i32
  }
  func.func @transform_8(%arg0: i32) -> (i32, i32) {
    %c0_i32 = arith.constant 0 : i32
    %c0_i32_0 = arith.constant 0 : i32
    return %c0_i32, %arg0 : i32, i32
  }
}

</mosaic_0001>

<llo_original>
// kernel: policy_forward.1
$region0: #{policy_forward.1}
  #allocation0 [shape = 'u32[]', space=smem, size = 0x4, offset = 0x4, fixed_abs, tag = 'smem constant byte address 0x4 - core index']
  #allocation1 [shape = 'u32[72,128]{1,0:T(1,128)}', space=vmem, size = 0x9000, scoped, tag = 'internal scratch']
  %s0 = inlined_call_operand.vmem [shape: f32[4,256], index: 0, kind: input, shape index: {}]
  %s1 = inlined_call_operand.vmem [shape: f32[32,4], index: 1, kind: input, shape index: {}]
  %s2 = inlined_call_operand.vmem [shape: f32[32,1], index: 2, kind: input, shape index: {}]
  %s3 = inlined_call_operand.vmem [shape: f32[32,32], index: 3, kind: input, shape index: {}]
  %s4 = inlined_call_operand.vmem [shape: f32[32,1], index: 4, kind: input, shape index: {}]
  %s5 = inlined_call_operand.vmem [shape: f32[2,32], index: 5, kind: input, shape index: {}]
  %s6 = inlined_call_operand.vmem [shape: f32[2,1], index: 6, kind: input, shape index: {}]
  %s7 = inlined_call_operand.vmem [shape: f32[2,2], index: 7, kind: input, shape index: {}]
  %s8 = inlined_call_operand.hbm [shape: f32[2,256], index: 8, kind: output, shape index: {}]
  %s9 = sld [smem:[#allocation0]]
  $region42: #{policy_forward.1} parent=0
    _
  %s11 = ssub.s32 1, %s9
  %s12 = scalar_select 0, %s11, %s9
  $region1: #{policy_forward.1} parent=0
    #allocation2 [shape = 'u8[2048]{0}', space=vmem, size = 0x800, scoped, tag = 'output window, operand 0, single buffered']
    #allocation3 [shape = 's32[1]{0}', space=sflag, size = 0x4, scoped, tag = 'scoped memory for policy_forward.1']
    %13 = vsyncpa [#allocation3], 0
    // Predicated region
    $region2: #{policy_forward.1} parent=1 // pred_check
      _
    $region3: #{policy_forward.1} parent=1 // pred_check_branch
      %15 = sbr.rel (0) target = $region5
    $region4: #{policy_forward.1} parent=1 // pred_region
      _
    $region5: #{policy_forward.1} parent=1 // pred_fallthru
      _
    // Predicated region
    $region6: #{policy_forward.1} parent=1 // pred_check
      _
    $region7: #{policy_forward.1} parent=1 // pred_check_branch
      %17 = sbr.rel (0) target = $region9
    $region8: #{policy_forward.1} parent=1 // pred_region
      _
    $region9: #{policy_forward.1} parent=1 // pred_fallthru
      _
    // Predicated region
    $region10: #{policy_forward.1} parent=1 // pred_check
      _
    $region11: #{policy_forward.1} parent=1 // pred_check_branch
      %19 = sbr.rel (0) target = $region13
    $region12: #{policy_forward.1} parent=1 // pred_region
      _
    $region13: #{policy_forward.1} parent=1 // pred_fallthru
      _
    // Predicated region
    $region14: #{policy_forward.1} parent=1 // pred_check
      _
    $region15: #{policy_forward.1} parent=1 // pred_check_branch
      %21 = sbr.rel (0) target = $region17
    $region16: #{policy_forward.1} parent=1 // pred_region
      _
    $region17: #{policy_forward.1} parent=1 // pred_fallthru
      _
    // Predicated region
    $region18: #{policy_forward.1} parent=1 // pred_check
      _
    $region19: #{policy_forward.1} parent=1 // pred_check_branch
      %23 = sbr.rel (0) target = $region21
    $region20: #{policy_forward.1} parent=1 // pred_region
      _
    $region21: #{policy_forward.1} parent=1 // pred_fallthru
      _
    // Predicated region
    $region22: #{policy_forward.1} parent=1 // pred_check
      _
    $region23: #{policy_forward.1} parent=1 // pred_check_branch
      %25 = sbr.rel (0) target = $region25
    $region24: #{policy_forward.1} parent=1 // pred_region
      _
    $region25: #{policy_forward.1} parent=1 // pred_fallthru
      _
    // Predicated region
    $region26: #{policy_forward.1} parent=1 // pred_check
      _
    $region27: #{policy_forward.1} parent=1 // pred_check_branch
      %27 = sbr.rel (0) target = $region29
    $region28: #{policy_forward.1} parent=1 // pred_region
      _
    $region29: #{policy_forward.1} parent=1 // pred_fallthru
      _
    // Predicated region
    $region30: #{policy_forward.1} parent=1 // pred_check
      _
    $region31: #{policy_forward.1} parent=1 // pred_check_branch
      %29 = sbr.rel (0) target = $region33
    $region32: #{policy_forward.1} parent=1 // pred_region
      _
    $region33: #{policy_forward.1} parent=1 // pred_fallthru
      _
    %v30 = vld [vmem:[%s0] sm:$0xff]
    %v31 = vld [vmem:[%s1] sm:$0xff]
    %v32 = vld [vmem:[%s1 + $0x8] sm:$0xff]
    %v33 = vld [vmem:[%s1 + $0x10] sm:$0xff]
    %v34 = vld [vmem:[%s1 + $0x18] sm:$0xff]
    %v35 = vld [vmem:[%s2] sm:$0xff]
    %v36 = vld [vmem:[%s2 + $0x8] sm:$0xff]
    %v37 = vld [vmem:[%s2 + $0x10] sm:$0xff]
    %v38 = vld [vmem:[%s2 + $0x18] sm:$0xff]
    %40 = vset.pattern.permute.xlu0 0
    %41 = vperm.xlu0 %40, %v35
    %v42 = vpop.permute.xlu0 %41
    %45 = vset.pattern.permute.xlu0 0
    %46 = vperm.xlu0 %45, %v36
    %v47 = vpop.permute.xlu0 %46
    %50 = vset.pattern.permute.xlu0 0
    %51 = vperm.xlu0 %50, %v37
    %v52 = vpop.permute.xlu0 %51
    %55 = vset.pattern.permute.xlu0 0
    %56 = vperm.xlu0 %55, %v38
    %v57 = vpop.permute.xlu0 %56
    %60 = vst [vmem:[#allocation1] ss:$2 sm:$0xff] %v30
    %v61 = vld.sshfl [vmem:[#allocation1] sm:$0xff pattern:$0x75316420]
    %v62 = vld.sshfl [vmem:[#allocation1 + $0x8] sm:$0xff pattern:$0x75316420]
    %vm63 = vcmask 31744
    %v65 = vsel %vm63, %v31, 0
    %v68 = vsel %vm63, %v32, 0
    %v71 = vsel %vm63, %v33, 0
    %v74 = vsel %vm63, %v34, 0
    %vm76 = vcmask 1043456
    %v77 = vsel %vm76, %v61, 0
    %v79 = vsel %vm76, %v62, 0
    %81 = vmatpush.msra.mxu0 0.0
    %82 = vmatpush.msra.mxu0 0.0
    %83 = vmatpush.msra.mxu0 0.0
    %84 = vmatpush.msra.mxu0 0.0
    %85 = vmatpush.msra.mxu0 0.0
    %86 = vmatpush.msra.mxu0 0.0
    %87 = vmatpush.msra.mxu0 0.0
    %88 = vmatpush.msra.mxu0 0.0
    %89 = vmatpush.msra.mxu0 0.0
    %90 = vmatpush.msra.mxu0 0.0
    %91 = vmatpush.msra.mxu0 0.0
    %92 = vmatpush.msra.mxu0 0.0
    %93 = vmatpush.msra.mxu0 0.0
    %94 = vmatpush.msra.mxu0 0.0
    %95 = vmatpush.msra.mxu0 0.0
    %96 = vmatpush.msra.mxu0 %v77
    %97 = vmatmul.f32.gmra.mxu0 %v65
    %v98 = vpop.f32.mrf.mxu0
    %v99 = vadd.f32 %v42, %v98
    %100 = vmatmul.f32.gmra.mxu0 %v68
    %v101 = vpop.f32.mrf.mxu0
    %v102 = vadd.f32 %v47, %v101
    %103 = vmatmul.f32.gmra.mxu0 %v71
    %v104 = vpop.f32.mrf.mxu0
    %v105 = vadd.f32 %v52, %v104
    %106 = vmatmul.f32.gmra.mxu0 %v74
    %v107 = vpop.f32.mrf.mxu0
    %v108 = vadd.f32 %v57, %v107
    %109 = vdwg.mxu0
    %110 = vmatpush.msra.mxu0 0.0
    %111 = vmatpush.msra.mxu0 0.0
    %112 = vmatpush.msra.mxu0 0.0
    %113 = vmatpush.msra.mxu0 0.0
    %114 = vmatpush.msra.mxu0 0.0
    %115 = vmatpush.msra.mxu0 0.0
    %116 = vmatpush.msra.mxu0 0.0
    %117 = vmatpush.msra.mxu0 0.0
    %118 = vmatpush.msra.mxu0 0.0
    %119 = vmatpush.msra.mxu0 0.0
    %120 = vmatpush.msra.mxu0 0.0
    %121 = vmatpush.msra.mxu0 0.0
    %122 = vmatpush.msra.mxu0 0.0
    %123 = vmatpush.msra.mxu0 0.0
    %124 = vmatpush.msra.mxu0 0.0
    %125 = vmatpush.msra.mxu0 %v79
    %126 = vmatmul.f32.gmra.mxu0 %v65
    %v127 = vpop.f32.mrf.mxu0
    %v128 = vadd.f32 %v42, %v127
    %129 = vmatmul.f32.gmra.mxu0 %v68
    %v130 = vpop.f32.mrf.mxu0
    %v131 = vadd.f32 %v47, %v130
    %132 = vmatmul.f32.gmra.mxu0 %v71
    %v133 = vpop.f32.mrf.mxu0
    %v134 = vadd.f32 %v52, %v133
    %135 = vmatmul.f32.gmra.mxu0 %v74
    %v136 = vpop.f32.mrf.mxu0
    %v137 = vadd.f32 %v57, %v136
    %138 = vdwg.mxu0
    %v139 = vmax.f32 %v99, 0.0
    %v140 = vmax.f32 %v128, 0.0
    %v141 = vmax.f32 %v102, 0.0
    %v142 = vmax.f32 %v131, 0.0
    %v143 = vmax.f32 %v105, 0.0
    %v144 = vmax.f32 %v134, 0.0
    %v145 = vmax.f32 %v108, 0.0
    %v146 = vmax.f32 %v137, 0.0
    %v147 = vld [vmem:[%s3] sm:$0xff]
    %v148 = vld [vmem:[%s3 + $0x8] sm:$0xff]
    %v149 = vld [vmem:[%s3 + $0x10] sm:$0xff]
    %v150 = vld [vmem:[%s3 + $0x18] sm:$0xff]
    %v151 = vld [vmem:[%s4] sm:$0xff]
    %v152 = vld [vmem:[%s4 + $0x8] sm:$0xff]
    %v153 = vld [vmem:[%s4 + $0x10] sm:$0xff]
    %v154 = vld [vmem:[%s4 + $0x18] sm:$0xff]
    %156 = vset.pattern.permute.xlu0 0
    %157 = vperm.xlu0 %156, %v151
    %v158 = vpop.permute.xlu0 %157
    %161 = vset.pattern.permute.xlu0 0
    %162 = vperm.xlu0 %161, %v152
    %v163 = vpop.permute.xlu0 %162
    %166 = vset.pattern.permute.xlu0 0
    %167 = vperm.xlu0 %166, %v153
    %v168 = vpop.permute.xlu0 %167
    %171 = vset.pattern.permute.xlu0 0
    %172 = vperm.xlu0 %171, %v154
    %v173 = vpop.permute.xlu0 %172
    %vm175 = vcmask 261120
    %v177 = vsel %vm175, %v147, 0
    %v180 = vsel %vm175, %v148, 0
    %v183 = vsel %vm175, %v149, 0
    %v186 = vsel %vm175, %v150, 0
    %188 = vmatpush.msra.mxu0 0.0
    %189 = vmatpush.msra.mxu0 0.0
    %190 = vmatpush.msra.mxu0 0.0
    %191 = vmatpush.msra.mxu0 0.0
    %192 = vmatpush.msra.mxu0 0.0
    %193 = vmatpush.msra.mxu0 0.0
    %194 = vmatpush.msra.mxu0 0.0
    %195 = vmatpush.msra.mxu0 0.0
    %196 = vmatpush.msra.mxu0 0.0
    %197 = vmatpush.msra.mxu0 0.0
    %198 = vmatpush.msra.mxu0 0.0
    %199 = vmatpush.msra.mxu0 0.0
    %200 = vmatpush.msra.mxu0 %v145
    %201 = vmatpush.msra.mxu0 %v143
    %202 = vmatpush.msra.mxu0 %v141
    %203 = vmatpush.msra.mxu0 %v139
    %204 = vmatmul.f32.gmra.mxu0 %v177
    %v205 = vpop.f32.mrf.mxu0
    %v206 = vadd.f32 %v158, %v205
    %207 = vmatmul.f32.gmra.mxu0 %v180
    %v208 = vpop.f32.mrf.mxu0
    %v209 = vadd.f32 %v163, %v208
    %210 = vmatmul.f32.gmra.mxu0 %v183
    %v211 = vpop.f32.mrf.mxu0
    %v212 = vadd.f32 %v168, %v211
    %213 = vmatmul.f32.gmra.mxu0 %v186
    %v214 = vpop.f32.mrf.mxu0
    %v215 = vadd.f32 %v173, %v214
    %216 = vdwg.mxu0
    %217 = vmatpush.msra.mxu0 0.0
    %218 = vmatpush.msra.mxu0 0.0
    %219 = vmatpush.msra.mxu0 0.0
    %220 = vmatpush.msra.mxu0 0.0
    %221 = vmatpush.msra.mxu0 0.0
    %222 = vmatpush.msra.mxu0 0.0
    %223 = vmatpush.msra.mxu0 0.0
    %224 = vmatpush.msra.mxu0 0.0
    %225 = vmatpush.msra.mxu0 0.0
    %226 = vmatpush.msra.mxu0 0.0
    %227 = vmatpush.msra.mxu0 0.0
    %228 = vmatpush.msra.mxu0 0.0
    %229 = vmatpush.msra.mxu0 %v146
    %230 = vmatpush.msra.mxu0 %v144
    %231 = vmatpush.msra.mxu0 %v142
    %232 = vmatpush.msra.mxu0 %v140
    %233 = vmatmul.f32.gmra.mxu0 %v177
    %v234 = vpop.f32.mrf.mxu0
    %v235 = vadd.f32 %v158, %v234
    %236 = vmatmul.f32.gmra.mxu0 %v180
    %v237 = vpop.f32.mrf.mxu0
    %v238 = vadd.f32 %v163, %v237
    %239 = vmatmul.f32.gmra.mxu0 %v183
    %v240 = vpop.f32.mrf.mxu0
    %v241 = vadd.f32 %v168, %v240
    %242 = vmatmul.f32.gmra.mxu0 %v186
    %v243 = vpop.f32.mrf.mxu0
    %v244 = vadd.f32 %v173, %v243
    %245 = vdwg.mxu0
    %v246 = vmax.f32 %v206, 0.0
    %v247 = vmax.f32 %v235, 0.0
    %v248 = vmax.f32 %v209, 0.0
    %v249 = vmax.f32 %v238, 0.0
    %v250 = vmax.f32 %v212, 0.0
    %v251 = vmax.f32 %v241, 0.0
    %v252 = vmax.f32 %v215, 0.0
    %v253 = vmax.f32 %v244, 0.0
    %v254 = vld [vmem:[%s5] sm:$0x3]
    %v255 = vld [vmem:[%s6] sm:$0x3]
    %257 = vset.pattern.permute.xlu0 0
    %258 = vperm.xlu0 %257, %v255
    %v259 = vpop.permute.xlu0 %258
    %v262 = vsel %vm175, %v254, 0
    %264 = vmatpush.msra.mxu0 0.0
    %265 = vmatpush.msra.mxu0 0.0
    %266 = vmatpush.msra.mxu0 0.0
    %267 = vmatpush.msra.mxu0 0.0
    %268 = vmatpush.msra.mxu0 0.0
    %269 = vmatpush.msra.mxu0 0.0
    %270 = vmatpush.msra.mxu0 0.0
    %271 = vmatpush.msra.mxu0 0.0
    %272 = vmatpush.msra.mxu0 0.0
    %273 = vmatpush.msra.mxu0 0.0
    %274 = vmatpush.msra.mxu0 0.0
    %275 = vmatpush.msra.mxu0 0.0
    %276 = vmatpush.msra.mxu0 %v252
    %277 = vmatpush.msra.mxu0 %v250
    %278 = vmatpush.msra.mxu0 %v248
    %279 = vmatpush.msra.mxu0 %v246
    %280 = vmatmul.f32.gmra.mxu0 %v262
    %v281 = vpop.f32.mrf.mxu0
    %v282 = vadd.f32 %v259, %v281
    %283 = vdwg.mxu0
    %284 = vmatpush.msra.mxu0 0.0
    %285 = vmatpush.msra.mxu0 0.0
    %286 = vmatpush.msra.mxu0 0.0
    %287 = vmatpush.msra.mxu0 0.0
    %288 = vmatpush.msra.mxu0 0.0
    %289 = vmatpush.msra.mxu0 0.0
    %290 = vmatpush.msra.mxu0 0.0
    %291 = vmatpush.msra.mxu0 0.0
    %292 = vmatpush.msra.mxu0 0.0
    %293 = vmatpush.msra.mxu0 0.0
    %294 = vmatpush.msra.mxu0 0.0
    %295 = vmatpush.msra.mxu0 0.0
    %296 = vmatpush.msra.mxu0 %v253
    %297 = vmatpush.msra.mxu0 %v251
    %298 = vmatpush.msra.mxu0 %v249
    %299 = vmatpush.msra.mxu0 %v247
    %300 = vmatmul.f32.gmra.mxu0 %v262
    %v301 = vpop.f32.mrf.mxu0
    %v302 = vadd.f32 %v259, %v301
    %303 = vdwg.mxu0
    %vm304 = vcmask 1041408
    %v305 = vsel %vm304, %v282, -inf
    %v306 = vrot.slane %v305, 4
    %v307 = vmax.f32 %v305, %v306
    %v308 = vrot.slane %v307, 2
    %v309 = vmax.f32 %v307, %v308
    %v310 = vrot.slane %v309, 1
    %v311 = vmax.f32 %v309, %v310
    %v312 = vsel %vm304, %v302, -inf
    %v313 = vrot.slane %v312, 4
    %v314 = vmax.f32 %v312, %v313
    %v315 = vrot.slane %v314, 2
    %v316 = vmax.f32 %v314, %v315
    %v317 = vrot.slane %v316, 1
    %v318 = vmax.f32 %v316, %v317
    %v319 = vsub.f32 %v282, %v311
    %v320 = vsub.f32 %v302, %v318
    %v321 = vmul.f32 %v319, 1.442695
    %v322 = vpow.pop %v321
    %v323 = vmul.f32 %v320, 1.442695
    %v324 = vpow.pop %v323
    %v325 = vsel %vm304, %v322, 0.0
    %v326 = vrot.slane %v325, 4
    %v327 = vadd.f32 %v325, %v326
    %v328 = vrot.slane %v327, 2
    %v329 = vadd.f32 %v327, %v328
    %v330 = vrot.slane %v329, 1
    %v331 = vadd.f32 %v329, %v330
    %v332 = vsel %vm304, %v324, 0.0
    %v333 = vrot.slane %v332, 4
    %v334 = vadd.f32 %v332, %v333
    %v335 = vrot.slane %v334, 2
    %v336 = vadd.f32 %v334, %v335
    %v337 = vrot.slane %v336, 1
    %v338 = vadd.f32 %v336, %v337
    %v339 = vlog2.pop %v331
    %v340 = vmul.f32 %v339, 0.6931472
    %v341 = vlog2.pop %v338
    %v342 = vmul.f32 %v341, 0.6931472
    %v343 = vsub.f32 %v319, %v340
    %v344 = vsub.f32 %v320, %v342
    %v345 = vld [vmem:[%s7] sm:$0x3]
    %vm346 = vcmask 15360
    %v348 = vsel %vm346, %v345, 0
    %v351 = vsel %vm304, %v343, 0
    %v354 = vsel %vm304, %v344, 0
    %356 = vmatpush.msra.mxu0 0.0
    %357 = vmatpush.msra.mxu0 0.0
    %358 = vmatpush.msra.mxu0 0.0
    %359 = vmatpush.msra.mxu0 0.0
    %360 = vmatpush.msra.mxu0 0.0
    %361 = vmatpush.msra.mxu0 0.0
    %362 = vmatpush.msra.mxu0 0.0
    %363 = vmatpush.msra.mxu0 0.0
    %364 = vmatpush.msra.mxu0 0.0
    %365 = vmatpush.msra.mxu0 0.0
    %366 = vmatpush.msra.mxu0 0.0
    %367 = vmatpush.msra.mxu0 0.0
    %368 = vmatpush.msra.mxu0 0.0
    %369 = vmatpush.msra.mxu0 0.0
    %370 = vmatpush.msra.mxu0 0.0
    %371 = vmatpush.msra.mxu0 %v351
    %372 = vmatmul.f32.gmra.mxu0 %v348
    %v373 = vpop.f32.mrf.mxu0
    %v374 = vadd.f32 0.0, %v373
    %375 = vdwg.mxu0
    %376 = vmatpush.msra.mxu0 0.0
    %377 = vmatpush.msra.mxu0 0.0
    %378 = vmatpush.msra.mxu0 0.0
    %379 = vmatpush.msra.mxu0 0.0
    %380 = vmatpush.msra.mxu0 0.0
    %381 = vmatpush.msra.mxu0 0.0
    %382 = vmatpush.msra.mxu0 0.0
    %383 = vmatpush.msra.mxu0 0.0
    %384 = vmatpush.msra.mxu0 0.0
    %385 = vmatpush.msra.mxu0 0.0
    %386 = vmatpush.msra.mxu0 0.0
    %387 = vmatpush.msra.mxu0 0.0
    %388 = vmatpush.msra.mxu0 0.0
    %389 = vmatpush.msra.mxu0 0.0
    %390 = vmatpush.msra.mxu0 0.0
    %391 = vmatpush.msra.mxu0 %v354
    %392 = vmatmul.f32.gmra.mxu0 %v348
    %v393 = vpop.f32.mrf.mxu0
    %v394 = vadd.f32 0.0, %v393
    %395 = vdwg.mxu0
    %v398 = vrot.slane %v394, 6
    %v399 = vsel %vm304, %v374, %v398
    %401 = vst [vmem:[#allocation2] sm:$0xf] %v399
    // Predicated region
    $region34: #{policy_forward.1} parent=1 // pred_check
      _
    $region35: #{policy_forward.1} parent=1 // pred_check_branch
      %403 = sbr.rel (0) target = $region37
    $region36: #{policy_forward.1} parent=1 // pred_region
      %405 = vsyncadd [#allocation3], 0
      %s407 = sshll.u32 [#allocation2], 4
      %s408 = int_to_ptr.vmem [resolvable:$true] %s407
      %s409 = sshll.u32 %s8, 4
      %s410 = int_to_ptr.hbm [resolvable:$true] %s409
      %412 = dma.vmem_to_hbm [thread:$0]  %s408, 64, %s410, [#allocation3]
    $region37: #{policy_forward.1} parent=1 // pred_fallthru
      _
    // Predicated region
    $region38: #{policy_forward.1} parent=1 // pred_check
      _
    $region39: #{policy_forward.1} parent=1 // pred_check_branch
      %414 = sbr.rel (0) target = $region41
    $region40: #{policy_forward.1} parent=1 // pred_region
      %416 = dma.done [#allocation3], 64
    $region41: #{policy_forward.1} parent=1 // pred_fallthru
      _
    %417 = vsyncpa [#allocation3], 1

</llo_original>
